<compile_context>
chip_gen: v5e
topology: v5e:2x2
jax: 0.10.0
libtpu: 0.0.40
codegen_flags: <defaults>
</compile_context>

<pallas_src>
import functools
import math

import jax
import jax.numpy as jnp
from jax import lax
from jax.experimental import pallas as pl
from jax.experimental.pallas import tpu as pltpu


# ----------------------------------------------------------------------------
# Tiled GEMM kernels with fused epilogues
# ----------------------------------------------------------------------------
def _pick_tile(dim, candidates=(512, 256, 128)):
    """Largest MXU-friendly tile that evenly divides `dim`, else the full dim."""
    for c in candidates:
        if dim % c == 0:
            return c
    return dim


def _apply_epilogue(acc, epilogue, res, g, bt, eps):
    """Fused epilogue, all math in f32."""
    if epilogue == "relu":
        return jnp.maximum(acc, 0.0)
    if epilogue == "add_relu":
        return jnp.maximum(acc + res, 0.0)
    if epilogue == "add_ln":
        h = acc + res
        mu = jnp.mean(h, axis=-1, keepdims=True)
        var = jnp.mean((h - mu) ** 2, axis=-1, keepdims=True)
        return (h - mu) * lax.rsqrt(var + eps) * g + bt
    if epilogue == "logsoftmax":
        m = jnp.max(acc, axis=-1, keepdims=True)
        s = acc - m
        return s - jnp.log(jnp.sum(jnp.exp(s), axis=-1, keepdims=True))
    return acc


def _linear_kernel_1k(*refs, epilogue, eps):
    """Single-K-block GEMM: no accumulator scratch, no init/finalize guards."""
    if epilogue == "add_ln":
        x_ref, w_ref, b_ref, res_ref, g_ref, bt_ref, o_ref = refs
        res, g, bt = res_ref[...], g_ref[...], bt_ref[...]
    elif epilogue == "add_relu":
        x_ref, w_ref, b_ref, res_ref, o_ref = refs
        res, g, bt = res_ref[...], None, None
    else:
        x_ref, w_ref, b_ref, o_ref = refs
        res = g = bt = None

    acc = jnp.dot(x_ref[...].astype(jnp.bfloat16),
                  w_ref[...].astype(jnp.bfloat16),
                  preferred_element_type=jnp.float32) + b_ref[...]
    o_ref[...] = _apply_epilogue(acc, epilogue, res, g, bt, eps).astype(o_ref.dtype)


def _linear_kernel_multik(*refs, epilogue, eps):
    """K-tiled GEMM with VMEM accumulator; epilogue fused on the last K step."""
    if epilogue == "add_ln":
        x_ref, w_ref, b_ref, res_ref, g_ref, bt_ref, o_ref, acc_ref = refs
    elif epilogue == "add_relu":
        x_ref, w_ref, b_ref, res_ref, o_ref, acc_ref = refs
    else:
        x_ref, w_ref, b_ref, o_ref, acc_ref = refs

    k = pl.program_id(2)

    @pl.when(k == 0)
    def _():
        acc_ref[...] = jnp.zeros_like(acc_ref)

    acc_ref[...] += jnp.dot(
        x_ref[...].astype(jnp.bfloat16),
        w_ref[...].astype(jnp.bfloat16),
        preferred_element_type=jnp.float32)

    @pl.when(k == pl.num_programs(2) - 1)
    def _():
        acc = acc_ref[...] + b_ref[...]
        if epilogue == "add_ln":
            res, g, bt = res_ref[...], g_ref[...], bt_ref[...]
        elif epilogue == "add_relu":
            res, g, bt = res_ref[...], None, None
        else:
            res = g = bt = None
        o_ref[...] = _apply_epilogue(acc, epilogue, res, g, bt,
                                     eps).astype(o_ref.dtype)


def linear(x, w, b, *, epilogue=None, residual=None, gamma=None, beta=None,
           eps=1e-5):
    """x:(M,K) @ w:(K,N) + b:(N,) with a fused epilogue, grid-tiled on TPU."""
    M, K = x.shape
    N = w.shape[1]
    row_wise = epilogue in ("add_ln", "logsoftmax")   # epilogue needs full row
    tm = _pick_tile(M)
    tn = N if row_wise else _pick_tile(N)
    tk = _pick_tile(K)
    nk = K // tk

    single_k = nk == 1

    if single_k:
        grid = (M // tm, N // tn)
        in_specs = [pl.BlockSpec((tm, K), lambda i, j: (i, 0)),
                    pl.BlockSpec((K, tn), lambda i, j: (0, j)),
                    pl.BlockSpec((1, tn), lambda i, j: (0, j))]
        res_spec = pl.BlockSpec((tm, tn), lambda i, j: (i, j))
        vec_spec = pl.BlockSpec((1, tn), lambda i, j: (0, j))
        out_spec = pl.BlockSpec((tm, tn), lambda i, j: (i, j))
        scratch = []
        dims = ("parallel", "parallel")
        kernel = functools.partial(_linear_kernel_1k, epilogue=epilogue, eps=eps)
    else:
        grid = (M // tm, N // tn, nk)
        in_specs = [pl.BlockSpec((tm, tk), lambda i, j, k: (i, k)),
                    pl.BlockSpec((tk, tn), lambda i, j, k: (k, j)),
                    pl.BlockSpec((1, tn), lambda i, j, k: (0, j))]
        res_spec = pl.BlockSpec((tm, tn), lambda i, j, k: (i, j))
        vec_spec = pl.BlockSpec((1, tn), lambda i, j, k: (0, j))
        out_spec = pl.BlockSpec((tm, tn), lambda i, j, k: (i, j))
        scratch = [pltpu.VMEM((tm, tn), jnp.float32)]
        dims = ("parallel", "parallel", "arbitrary")
        kernel = functools.partial(_linear_kernel_multik, epilogue=epilogue,
                                   eps=eps)

    args = [x, w, b.reshape(1, N)]
    if epilogue in ("add_relu", "add_ln"):
        in_specs.append(res_spec)
        args.append(residual)
    if epilogue == "add_ln":
        in_specs.append(vec_spec)
        in_specs.append(vec_spec)
        args.append(gamma.reshape(1, N))
        args.append(beta.reshape(1, N))

    return pl.pallas_call(
        kernel,
        grid=grid,
        in_specs=in_specs,
        out_specs=out_spec,
        out_shape=jax.ShapeDtypeStruct((M, N), jnp.float32),
        scratch_shapes=scratch,
        compiler_params=pltpu.CompilerParams(dimension_semantics=dims),
    )(*args)


# ----------------------------------------------------------------------------
# Multi-head self-attention: one batch element per grid step, all heads
# in-kernel via static column slices of the fused QKV slab.
# ----------------------------------------------------------------------------
def _mhsa_kernel(qkv_ref, o_ref, *w_refs, num_heads, head_dim, scale):
    d_model = num_heads * head_dim
    qkv = qkv_ref[0]                                  # (T, 3*D) f32
    outs = []
    probs = []
    for h in range(num_heads):
        # Pre-scale q (T x Dh) once; cheaper than scaling the (T x T) scores.
        q = qkv[:, h * head_dim:(h + 1) * head_dim] * scale
        k = qkv[:, d_model + h * head_dim: d_model + (h + 1) * head_dim]
        v = qkv[:, 2 * d_model + h * head_dim: 2 * d_model + (h + 1) * head_dim]
        # contract head dims directly (no explicit transpose)
        s = lax.dot_general(q.astype(jnp.bfloat16), k.astype(jnp.bfloat16),
                            (((1,), (1,)), ((), ())),
                            preferred_element_type=jnp.float32)
        m = jnp.max(s, axis=-1, keepdims=True)
        e = jnp.exp(s - m)
        p = e * pl.reciprocal(jnp.sum(e, axis=-1, keepdims=True), approx=True)
        o = jnp.dot(p.astype(jnp.bfloat16), v.astype(jnp.bfloat16),
                    preferred_element_type=jnp.float32)
        outs.append(o)
        if w_refs:
            probs.append(p)
    # One lane-dense store for the whole (T, D) output tile.
    o_ref[0] = jnp.concatenate(outs, axis=-1).astype(o_ref.dtype)
    if w_refs:
        w_refs[0][0] = jnp.stack(probs, axis=0)


def attention(qkv, num_heads, head_dim, *, return_weights):
    """qkv: (B, T, 3*D) -> (attn_out (B,T,D), attn_weights (B,H,T,T) or None)."""
    B, T, three_d = qkv.shape
    d_model = num_heads * head_dim
    scale = 1.0 / math.sqrt(head_dim)
    kernel = functools.partial(_mhsa_kernel, num_heads=num_heads,
                               head_dim=head_dim, scale=scale)
    out_shape = [jax.ShapeDtypeStruct((B, T, d_model), jnp.float32)]
    out_specs = [pl.BlockSpec((1, T, d_model), lambda b: (b, 0, 0))]
    if return_weights:
        out_shape.append(
            jax.ShapeDtypeStruct((B, num_heads, T, T), jnp.float32))
        out_specs.append(
            pl.BlockSpec((1, num_heads, T, T), lambda b: (b, 0, 0, 0)))

    res = pl.pallas_call(
        kernel,
        grid=(B,),
        in_specs=[pl.BlockSpec((1, T, three_d), lambda b: (b, 0, 0))],
        out_specs=tuple(out_specs),
        out_shape=tuple(out_shape),
        compiler_params=pltpu.CompilerParams(dimension_semantics=("parallel",)),
    )(qkv)
    if return_weights:
        return res[0], res[1]
    return res[0], None


# ----------------------------------------------------------------------------
# Glue: im2col (NTC layout, no host transposes), BN folding, positional enc.
# ----------------------------------------------------------------------------
def im2col_ntc(x, kernel, stride, padding):
    """x: (B, T, C) -> patches (B*T_out, C*kernel) with c-major/k-minor order."""
    B, T, C = x.shape
    xp = jnp.pad(x, ((0, 0), (padding, padding), (0, 0)))
    t_out = (T + 2 * padding - kernel) // stride + 1
    cols = jnp.stack(
        [xp[:, k:k + stride * t_out:stride, :] for k in range(kernel)],
        axis=-1)                                     # (B, T_out, C, K)
    return cols.reshape(B * t_out, C * kernel), t_out


def fold_bn_conv(w, gamma, beta, mean, var, eps=1e-5):
    """Fold eval-mode BatchNorm1d into a conv weight (C_out, C_in, K)."""
    scale = gamma / jnp.sqrt(var + eps)
    w_f = w * scale[:, None, None]
    b_f = beta - mean * scale
    w_mat = w_f.reshape(w.shape[0], -1).T            # (C_in*K, C_out)
    return w_mat.astype(jnp.bfloat16), b_f.astype(jnp.float32)


def sinusoidal_pe(max_len, d_model):
    pos = jnp.arange(max_len, dtype=jnp.float32)[:, None]
    div = jnp.exp(jnp.arange(0, d_model, 2, dtype=jnp.float32)
                  * (-jnp.log(10000.0) / d_model))
    pe = jnp.zeros((max_len, d_model), jnp.float32)
    pe = pe.at[:, 0::2].set(jnp.sin(pos * div))
    pe = pe.at[:, 1::2].set(jnp.cos(pos * div))
    return pe


def init_params(key, input_dim, num_layers, d_model, num_heads, d_ff,
                max_len, num_classes):
    keys = iter(jax.random.split(key, 256))

    def nrm(shape, s=0.05):
        return jax.random.normal(next(keys), shape, jnp.float32) * s

    def bn(c):
        return dict(gamma=1.0 + nrm((c,), 0.01), beta=nrm((c,), 0.01),
                    mean=nrm((c,), 0.01), var=1.0 + jnp.abs(nrm((c,), 0.01)))

    # ResBlockEmbedding (BN folded into conv weights)
    bn1, bn2, bns = bn(d_model), bn(d_model), bn(d_model)
    conv1_w, conv1_b = fold_bn_conv(nrm((d_model, input_dim, 3)), **bn1)
    conv2_w, conv2_b = fold_bn_conv(nrm((d_model, d_model, 3)), **bn2)
    convs_w, convs_b = fold_bn_conv(nrm((d_model, input_dim, 1)), **bns)

    layers = []
    for _ in range(num_layers):
        wq, wk, wv = nrm((d_model, d_model)), nrm((d_model, d_model)), nrm(
            (d_model, d_model))
        bq, bk, bv = nrm((d_model,)), nrm((d_model,)), nrm((d_model,))
        layers.append(dict(
            wqkv=jnp.concatenate([wq, wk, wv], axis=1).astype(jnp.bfloat16),
            bqkv=jnp.concatenate([bq, bk, bv]),
            wo=nrm((d_model, d_model)).astype(jnp.bfloat16), bo=nrm((d_model,)),
            ln1_g=jnp.ones((d_model,), jnp.float32),
            ln1_b=jnp.zeros((d_model,), jnp.float32),
            w1=nrm((d_model, d_ff)).astype(jnp.bfloat16), b1=nrm((d_ff,)),
            w2=nrm((d_ff, d_model)).astype(jnp.bfloat16), b2=nrm((d_model,)),
            ln2_g=jnp.ones((d_model,), jnp.float32),
            ln2_b=jnp.zeros((d_model,), jnp.float32),
        ))

    return dict(
        conv1_w=conv1_w, conv1_b=conv1_b,
        conv2_w=conv2_w, conv2_b=conv2_b,
        convs_w=convs_w, convs_b=convs_b,
        pos_encoding=sinusoidal_pe(max_len, d_model),
        layers=layers, num_heads=num_heads,
        wout=nrm((d_model, num_classes)).astype(jnp.bfloat16),
        bout=nrm((num_classes,)),
    )


# ----------------------------------------------------------------------------
# Forward pass (mirrors ASREncoder.forward)
# ----------------------------------------------------------------------------
def asr_encoder_forward(x, params):
    # x: (B, C_in, T)  -- PyTorch NCW conv layout
    B, Cin, T = x.shape
    H = params["num_heads"]

    x_ntc = jnp.transpose(x, (0, 2, 1))              # (B, T, Cin), one small transpose

    # --- ResBlockEmbedding ------------------------------------------------
    cols1, T1 = im2col_ntc(x_ntc, kernel=3, stride=2, padding=1)
    h1 = linear(cols1, params["conv1_w"], params["conv1_b"], epilogue="relu")
    D = h1.shape[-1]

    skip_in = x_ntc[:, ::2, :].reshape(B * T1, Cin)  # k=1, s=2 skip conv input
    skip = linear(skip_in, params["convs_w"], params["convs_b"])

    cols2, _ = im2col_ntc(h1.reshape(B, T1, D), kernel=3, stride=1, padding=1)
    emb = linear(cols2, params["conv2_w"], params["conv2_b"],
                 epilogue="add_relu", residual=skip)   # ReLU(conv2 + skip)

    # input_lengths = [len(i) for i in encoder_output] (seq length per sample)
    input_lengths = jnp.full((B,), T1, dtype=jnp.int32)
    # TODO(synk): per-sample lengths / attention masking not modeled (dense batch).

    # --- Positional encoding (+ dropout = identity at inference) -----------
    pe = params["pos_encoding"][:T1]
    xf = (emb.reshape(B, T1, D) + pe[None]).reshape(B * T1, D)

    # --- Transformer encoder layers (post-LN) ------------------------------
    Dh = D // H
    num_layers = len(params["layers"])
    attn_w = None
    for li, lp in enumerate(params["layers"]):
        last = li == num_layers - 1

        qkv = linear(xf, lp["wqkv"], lp["bqkv"])        # fused QKV (B*T1, 3D)
        ao, aw = attention(qkv.reshape(B, T1, 3 * D), H, Dh,
                           return_weights=last)
        if last:
            attn_w = aw                                 # (B, H, T1, T1)

        ao = ao.reshape(B * T1, D)                      # free reshape, no transpose
        xf = linear(ao, lp["wo"], lp["bo"], epilogue="add_ln",
                    residual=xf, gamma=lp["ln1_g"], beta=lp["ln1_b"])

        ff = linear(xf, lp["w1"], lp["b1"], epilogue="relu")
        xf = linear(ff, lp["w2"], lp["b2"], epilogue="add_ln",
                    residual=xf, gamma=lp["ln2_g"], beta=lp["ln2_b"])

    # --- Output projection + fused log-softmax -----------------------------
    logp = linear(xf, params["wout"], params["bout"],
                  epilogue="logsoftmax").reshape(B, T1, -1)

    return logp, input_lengths, attn_w


# ----------------------------------------------------------------------------
if __name__ == "__main__":
    B, Cin, T = 2, 4, 16
    num_layers, d_model, num_heads, d_ff = 2, 32, 4, 64
    mfcc_max_seq_length, num_classes = 64, 16

    key = jax.random.PRNGKey(0)
    kx, kp = jax.random.split(key)
    x = jax.random.normal(kx, (B, Cin, T), jnp.float32)   # (B, C_in, T) NCW
    params = init_params(kp, Cin, num_layers, d_model, num_heads, d_ff,
                         mfcc_max_seq_length, num_classes)

    logp, lengths, attn_w = asr_encoder_forward(x, params)
    jax.block_until_ready((logp, lengths, attn_w))

    assert logp.shape == (B, 8, num_classes)
    assert lengths.shape == (B,)
    assert attn_w.shape == (B, num_heads, 8, 8)
    print("KERNEL_OK")
</pallas_src>

<mosaic_0001>
module attributes {stable_mosaic.version = 11 : i64} {
  func.func @_linear_kernel_1k(%arg0: i32, %arg1: i32, %arg2: memref<16x12xf32, #tpu.memory_space<vmem>>, %arg3: memref<12x32xbf16, #tpu.memory_space<vmem>>, %arg4: memref<1x32xf32, #tpu.memory_space<vmem>>, %arg5: memref<16x32xf32, #tpu.memory_space<vmem>>) attributes {dimension_semantics = [#tpu.dimension_semantics<parallel>, #tpu.dimension_semantics<parallel>], iteration_bounds = array<i64: 1, 1>, scalar_prefetch = 0 : i64, scratch_operands = 0 : i64, tpu.core_type = #tpu.core_type<tc>, window_params = [{transform_indices = @transform_0, window_bounds = array<i64: 16, 12>}, {transform_indices = @transform_1, window_bounds = array<i64: 12, 32>}, {transform_indices = @transform_2, window_bounds = array<i64: 1, 32>}, {transform_indices = @transform_3, window_bounds = array<i64: 16, 32>}]} {
    %c0 = arith.constant 0 : index
    %c0_0 = arith.constant 0 : index
    %0 = vector.load %arg2[%c0, %c0_0] : memref<16x12xf32, #tpu.memory_space<vmem>>, vector<16x12xf32>
    %1 = arith.truncf %0 : vector<16x12xf32> to vector<16x12xbf16>
    %c0_1 = arith.constant 0 : index
    %c0_2 = arith.constant 0 : index
    %2 = vector.load %arg3[%c0_1, %c0_2] : memref<12x32xbf16, #tpu.memory_space<vmem>>, vector<12x32xbf16>
    %cst = arith.constant dense<0.000000e+00> : vector<16x32xf32>
    %3 = tpu.matmul %1, %2, %cst {dimension_numbers = #tpu.dot_dimension_numbers<[1], [0], [0], [1], [0, 0, 1, 1], [], []>} : vector<16x12xbf16>, vector<12x32xbf16>, vector<16x32xf32> -> vector<16x32xf32>
    %c0_3 = arith.constant 0 : index
    %c0_4 = arith.constant 0 : index
    %4 = vector.load %arg4[%c0_3, %c0_4] : memref<1x32xf32, #tpu.memory_space<vmem>>, vector<1x32xf32>
    %5 = vector.broadcast %4 : vector<1x32xf32> to vector<16x32xf32>
    %6 = arith.addf %3, %5 : vector<16x32xf32>
    %cst_5 = arith.constant 0.000000e+00 : f32
    %7 = vector.broadcast %cst_5 : f32 to vector<16x32xf32>
    %8 = arith.maximumf %6, %7 : vector<16x32xf32>
    %c0_6 = arith.constant 0 : index
    %c0_7 = arith.constant 0 : index
    %9 = vector.load %arg5[%c0_6, %c0_7] : memref<16x32xf32, #tpu.memory_space<vmem>>, vector<16x32xf32>
    tpu.vector_store %arg5[%c0_6, %c0_7], %8 {strides = array<i32>} : memref<16x32xf32, #tpu.memory_space<vmem>>, vector<16x32xf32>,
    return
  }
  func.func @transform_0(%arg0: i32, %arg1: i32) -> (i32, i32) {
    %c0_i32 = arith.constant 0 : i32
    %c0_i32_0 = arith.constant 0 : i32
    return %arg0, %c0_i32 : i32, i32
  }
  func.func @transform_1(%arg0: i32, %arg1: i32) -> (i32, i32) {
    %c0_i32 = arith.constant 0 : i32
    %c0_i32_0 = arith.constant 0 : i32
    return %c0_i32, %arg1 : i32, i32
  }
  func.func @transform_2(%arg0: i32, %arg1: i32) -> (i32, i32) {
    %c0_i32 = arith.constant 0 : i32
    %c0_i32_0 = arith.constant 0 : i32
    return %c0_i32, %arg1 : i32, i32
  }
  func.func @transform_3(%arg0: i32, %arg1: i32) -> (i32, i32) {
    %c0_i32 = arith.constant 0 : i32
    return %arg0, %arg1 : i32, i32
  }
}

</mosaic_0001>

<llo_original>
// kernel: tpu_custom_call.1
$region0: #{tpu_custom_call.1}
  #allocation0 [shape = 'u32[]', space=smem, size = 0x4, offset = 0x4, fixed_abs, tag = 'smem constant byte address 0x4 - core index']
  #allocation1 [shape = 'u32[72,128]{1,0:T(1,128)}', space=vmem, size = 0x9000, scoped, tag = 'internal scratch']
  %s0 = inlined_call_operand.hbm [shape: f32[16,12], index: 0, kind: input, shape index: {}]
  %s1 = inlined_call_operand.hbm [shape: bf16[12,32], index: 1, kind: input, shape index: {}]
  %s2 = inlined_call_operand.vmem [shape: f32[1,32], index: 2, kind: input, shape index: {}]
  %s3 = inlined_call_operand.hbm [shape: f32[16,32], index: 3, kind: output, shape index: {}]
  %s4 = sld [smem:[#allocation0]]
  $region30: #{tpu_custom_call.1} parent=0
    _
  %s6 = ssub.s32 1, %s4
  %s7 = scalar_select 0, %s6, %s4
  $region1: #{tpu_custom_call.1} parent=0
    #allocation2 [shape = 'u8[8192]{0}', space=vmem, size = 0x2000, scoped, tag = 'input window, operand 0, single buffered']
    #allocation3 [shape = 's32[1]{0}', space=sflag, size = 0x4, scoped, tag = 'scoped memory for tpu_custom_call.1']
    #allocation4 [shape = 's32[1]{0}', space=sflag, size = 0x4, scoped, tag = 'scoped memory for tpu_custom_call.1']
    #allocation5 [shape = 'u8[4096]{0}', space=vmem, size = 0x1000, scoped, tag = 'input window, operand 1, single buffered']
    #allocation6 [shape = 's32[1]{0}', space=sflag, size = 0x4, scoped, tag = 'scoped memory for tpu_custom_call.1']
    #allocation7 [shape = 'u8[8192]{0}', space=vmem, size = 0x2000, scoped, tag = 'output window, operand 0, single buffered']
    %8 = vsyncpa [#allocation3], 0
    %9 = vsyncpa [#allocation6], 0
    %10 = vsyncpa [#allocation4], 0
    // Predicated region
    $region2: #{tpu_custom_call.1} parent=1 // pred_check
      _
    $region3: #{tpu_custom_call.1} parent=1 // pred_check_branch
      %12 = sbr.rel (0) target = $region5
    $region4: #{tpu_custom_call.1} parent=1 // pred_region
      %14 = vsyncadd [#allocation3], 0
      %s15 = sshll.u32 %s0, 4
      %s16 = int_to_ptr.hbm [resolvable:$true] %s15
      %s17 = sshll.u32 [#allocation2], 4
      %s18 = int_to_ptr.vmem [resolvable:$true] %s17
      %23 = dma.hbm_to_vmem [thread:$0]  %s16, 256, %s18, [#allocation3], 128, 128, 8
    $region5: #{tpu_custom_call.1} parent=1 // pred_fallthru
      _
    // Predicated region
    $region6: #{tpu_custom_call.1} parent=1 // pred_check
      _
    $region7: #{tpu_custom_call.1} parent=1 // pred_check_branch
      %25 = sbr.rel (0) target = $region9
    $region8: #{tpu_custom_call.1} parent=1 // pred_region
      %27 = vsyncadd [#allocation6], 0
      %s28 = sshll.u32 %s1, 4
      %s29 = int_to_ptr.hbm [resolvable:$true] %s28
      %s30 = sshll.u32 [#allocation5], 4
      %s31 = int_to_ptr.vmem [resolvable:$true] %s30
      %36 = dma.hbm_to_vmem [thread:$0]  %s29, 128, %s31, [#allocation6], 64, 64, 4
    $region9: #{tpu_custom_call.1} parent=1 // pred_fallthru
      _
    // Predicated region
    $region10: #{tpu_custom_call.1} parent=1 // pred_check
      _
    $region11: #{tpu_custom_call.1} parent=1 // pred_check_branch
      %38 = sbr.rel (0) target = $region13
    $region12: #{tpu_custom_call.1} parent=1 // pred_region
      _
    $region13: #{tpu_custom_call.1} parent=1 // pred_fallthru
      _
    // Predicated region
    $region14: #{tpu_custom_call.1} parent=1 // pred_check
      _
    $region15: #{tpu_custom_call.1} parent=1 // pred_check_branch
      %40 = sbr.rel (0) target = $region17
    $region16: #{tpu_custom_call.1} parent=1 // pred_region
      %42 = dma.done [#allocation3], 256
    $region17: #{tpu_custom_call.1} parent=1 // pred_fallthru
      _
    // Predicated region
    $region18: #{tpu_custom_call.1} parent=1 // pred_check
      _
    $region19: #{tpu_custom_call.1} parent=1 // pred_check_branch
      %44 = sbr.rel (0) target = $region21
    $region20: #{tpu_custom_call.1} parent=1 // pred_region
      %46 = dma.done [#allocation6], 128
    $region21: #{tpu_custom_call.1} parent=1 // pred_fallthru
      _
    %v48 = vld [vmem:[#allocation2] sm:$0xff]
    %v49 = vld [vmem:[#allocation2 + $0x8] sm:$0xff]
    %v50 = vpack.c.bf16 %v49, %v48
    %v51 = vld [vmem:[#allocation5] sm:$0xf]
    %v52 = vld [vmem:[#allocation5 + $0x4] sm:$0x3]
    %v53 = vld [vmem:[%s2] sm:$0x1]
    %v55 = vperm.slane %v53, 0
    %v59 = vunpack.c.l.b16 %v51
    %v60 = vunpack.c.l.b16 %v52
    %v61 = vpack.c.b16 %v60, %v59
    %vm62 = vcmask 97280
    %v64 = vsel %vm62, %v50, 0
    %vm66 = vcmask 1045504
    %v68 = vsel %vm66, %v61, 0
    %70 = vmatpush.bf16.msra.mxu0 0
    %71 = vmatpush.bf16.msra.mxu0 0
    %72 = vmatpush.bf16.msra.mxu0 0
    %73 = vmatpush.bf16.msra.mxu0 0
    %74 = vmatpush.bf16.msra.mxu0 0
    %75 = vmatpush.bf16.msra.mxu0 0
    %76 = vmatpush.bf16.msra.mxu0 0
    %77 = vmatpush.bf16.msra.mxu0 %v68
    %78 = vmatmul.bf16.gmra.mxu0 %v64
    %v79 = vpop.f32.mrf.mxu0
    %v80 = vadd.f32 %v55, %v79
    %v81 = vpop.f32.mrf.mxu0
    %v82 = vadd.f32 %v55, %v81
    %83 = vdwg.mxu0
    %v84 = vmax.f32 %v80, 0.0
    %v85 = vmax.f32 %v82, 0.0
    %vm86 = vcmask 261120
    %87 = vst.msk [vmem:[#allocation7] sm:$0xff] %vm86, %v84
    %88 = vst.msk [vmem:[#allocation7 + $0x8] sm:$0xff] %vm86, %v85
    // Predicated region
    $region22: #{tpu_custom_call.1} parent=1 // pred_check
      _
    $region23: #{tpu_custom_call.1} parent=1 // pred_check_branch
      %90 = sbr.rel (0) target = $region25
    $region24: #{tpu_custom_call.1} parent=1 // pred_region
      %92 = vsyncadd [#allocation4], 0
      %s93 = sshll.u32 [#allocation7], 4
      %s94 = int_to_ptr.vmem [resolvable:$true] %s93
      %s95 = sshll.u32 %s3, 4
      %s96 = int_to_ptr.hbm [resolvable:$true] %s95
      %101 = dma.vmem_to_hbm [thread:$0]  %s94, 256, %s96, [#allocation4], 128, 128, 8
    $region25: #{tpu_custom_call.1} parent=1 // pred_fallthru
      _
    // Predicated region
    $region26: #{tpu_custom_call.1} parent=1 // pred_check
      _
    $region27: #{tpu_custom_call.1} parent=1 // pred_check_branch
      %103 = sbr.rel (0) target = $region29
    $region28: #{tpu_custom_call.1} parent=1 // pred_region
      %105 = dma.done [#allocation4], 256
    $region29: #{tpu_custom_call.1} parent=1 // pred_fallthru
      _
    %106 = vsyncpa [#allocation3], 1
    %107 = vsyncpa [#allocation6], 1
    %108 = vsyncpa [#allocation4], 1

</llo_original>
